<compile_context>
chip_gen: v7x
topology: tpu7x:2x2x1
jax: 0.10.0
libtpu: 0.0.40
codegen_flags: <defaults>
</compile_context>

<pallas_src>
import functools

import jax
import jax.numpy as jnp
from jax.experimental import pallas as pl
from jax.experimental.pallas import tpu as pltpu

LANE = 128


def _round_up(n, m):
    return ((n + m - 1) // m) * m


def bddqn_kernel(x_ref, w1_ref, b1_ref, w2_ref, b2_ref, w3_ref, b3_ref,
                 wh_ref, bh_ref, o_ref):
    # 3 hidden layers (matmul + bias + ReLU) and the fused [V | A_0..A_{Z-1}]
    # head.  Matmul inputs are cast to the weight dtype (f32 or bf16); all
    # accumulation and elementwise work stays in f32.
    cdt = w1_ref.dtype
    h = jnp.dot(x_ref[...], w1_ref[...],
                preferred_element_type=jnp.float32) + b1_ref[...]
    h = jnp.maximum(h, 0.0)
    h = jnp.dot(h.astype(cdt), w2_ref[...],
                preferred_element_type=jnp.float32) + b2_ref[...]
    h = jnp.maximum(h, 0.0)
    h = jnp.dot(h.astype(cdt), w3_ref[...],
                preferred_element_type=jnp.float32) + b3_ref[...]
    h = jnp.maximum(h, 0.0)
    o_ref[...] = jnp.dot(h.astype(cdt), wh_ref[...],
                         preferred_element_type=jnp.float32) + bh_ref[...]


def xavier_uniform(key, fan_in, fan_out, gain=1.0):
    bound = gain * (6.0 / (fan_in + fan_out)) ** 0.5
    # (fan_in, fan_out) == W^T relative to PyTorch's (out, in) layout
    return jax.random.uniform(key, (fan_in, fan_out), jnp.float32, -bound, bound)


def init_params(key, num_features, num_actions_zones, num_actions):
    keys = jax.random.split(key, 4 + num_actions_zones)

    fp = _round_up(num_features, LANE)
    w1 = xavier_uniform(keys[0], num_features, 512)
    # zero rows for the padded input lanes -> padding contributes nothing
    w1 = jnp.pad(w1, ((0, fp - num_features), (0, 0)))

    # fused head: [V (128->1) | A_0 .. A_{Z-1} (128->A each)], padded to 128 cols
    wv = xavier_uniform(keys[3], 128, 1)
    was = [xavier_uniform(keys[4 + i], 128, num_actions)
           for i in range(num_actions_zones)]
    wh = jnp.concatenate([wv] + was, axis=1)              # (128, 1 + Z*A)
    hw = 1 + num_actions_zones * num_actions
    hp = _round_up(hw, LANE)
    wh = jnp.pad(wh, ((0, 0), (0, hp - hw)))              # (128, hp)

    return {
        "w1": w1,                         "b1": jnp.zeros((1, 512), jnp.float32),
        "w2": xavier_uniform(keys[1], 512, 256),
        "b2": jnp.zeros((1, 256), jnp.float32),
        "w3": xavier_uniform(keys[2], 256, 128),
        "b3": jnp.zeros((1, 128), jnp.float32),
        "wh": wh,                         "bh": jnp.zeros((1, hp), jnp.float32),
    }


@functools.partial(jax.jit,
                   static_argnames=("num_actions_zones", "num_actions",
                                    "compute_dtype"))
def bddqn_forward(x, params, num_actions_zones, num_actions,
                  compute_dtype=jnp.float32):
    B, F = x.shape
    fp = params["w1"].shape[0]          # padded feature width (multiple of 128)
    hp = params["wh"].shape[1]          # padded head width (multiple of 128)

    # Batch tile: 256 rows fills the v6e/v7x MXU M dim (2 clean passes on v5e);
    # small batches become one sublane-aligned tile.
    TB = 256 if B >= 256 else _round_up(B, 8)
    Bp = _round_up(B, TB)

    xp = jnp.zeros((Bp, fp), compute_dtype).at[:B, :F].set(x.astype(compute_dtype))

    w1 = params["w1"].astype(compute_dtype)
    w2 = params["w2"].astype(compute_dtype)
    w3 = params["w3"].astype(compute_dtype)
    wh = params["wh"].astype(compute_dtype)

    resident = lambda arr: pl.BlockSpec(arr.shape, lambda i: (0, 0))

    out = pl.pallas_call(
        bddqn_kernel,
        out_shape=jax.ShapeDtypeStruct((Bp, hp), jnp.float32),
        grid=(Bp // TB,),
        in_specs=[
            pl.BlockSpec((TB, fp), lambda i: (i, 0)),     # x: tiled on batch
            resident(w1), resident(params["b1"]),
            resident(w2), resident(params["b2"]),
            resident(w3), resident(params["b3"]),
            resident(wh), resident(params["bh"]),
        ],
        out_specs=pl.BlockSpec((TB, hp), lambda i: (i, 0)),
        compiler_params=pltpu.CompilerParams(
            dimension_semantics=("parallel",),
            vmem_limit_bytes=16 << 20),
    )(xp,
      w1, params["b1"],
      w2, params["b2"],
      w3, params["b3"],
      wh, params["bh"])

    out = out[:B]
    v = out[:, :1]
    a_stpts = [out[:, 1 + i * num_actions: 1 + (i + 1) * num_actions]
               for i in range(num_actions_zones)]
    return v, a_stpts


def reference_forward(x, params, num_actions_zones, num_actions):
    F = x.shape[1]
    fp = params["w1"].shape[0]
    xp = jnp.pad(x, ((0, 0), (0, fp - F)))
    h = jax.nn.relu(xp @ params["w1"] + params["b1"])
    h = jax.nn.relu(h @ params["w2"] + params["b2"])
    h = jax.nn.relu(h @ params["w3"] + params["b3"])
    out = h @ params["wh"] + params["bh"]
    v = out[:, :1]
    a_stpts = [out[:, 1 + i * num_actions: 1 + (i + 1) * num_actions]
               for i in range(num_actions_zones)]
    return v, a_stpts


if __name__ == "__main__":
    key = jax.random.PRNGKey(0)
    k_x, k_p = jax.random.split(key)

    batch = 8
    num_features = 32
    num_actions_zones = 3
    num_actions = 8

    x = jax.random.normal(k_x, (batch, num_features), jnp.float32)
    params = init_params(k_p, num_features, num_actions_zones, num_actions)

    # f32 path: strict check against pure-JAX reference
    v, a_stpts = bddqn_forward(x, params, num_actions_zones, num_actions)
    v = jax.block_until_ready(v)
    a_stpts = [jax.block_until_ready(a) for a in a_stpts]

    v_ref, a_ref = reference_forward(x, params, num_actions_zones, num_actions)
    assert v.shape == (batch, 1)
    assert len(a_stpts) == num_actions_zones
    assert all(a.shape == (batch, num_actions) for a in a_stpts)
    assert jnp.allclose(v, v_ref, atol=1e-5, rtol=1e-5)
    for a, ar in zip(a_stpts, a_ref):
        assert jnp.allclose(a, ar, atol=1e-5, rtol=1e-5)

    # bf16 weight/activation path (MXU-rate lever on v6e/v7x): loose check
    v16, a16 = bddqn_forward(x, params, num_actions_zones, num_actions,
                             compute_dtype=jnp.bfloat16)
    v16 = jax.block_until_ready(v16)
    a16 = [jax.block_until_ready(a) for a in a16]
    assert jnp.allclose(v16, v_ref, atol=5e-2, rtol=5e-2)
    for a, ar in zip(a16, a_ref):
        assert jnp.allclose(a, ar, atol=5e-2, rtol=5e-2)

    print("KERNEL_OK")
</pallas_src>

<mosaic_0001>
module attributes {stable_mosaic.version = 11 : i64} {
  func.func @bddqn_kernel(%arg0: i32, %arg1: memref<8x128xf32, #tpu.memory_space<vmem>>, %arg2: memref<128x512xf32, #tpu.memory_space<vmem>>, %arg3: memref<1x512xf32, #tpu.memory_space<vmem>>, %arg4: memref<512x256xf32, #tpu.memory_space<vmem>>, %arg5: memref<1x256xf32, #tpu.memory_space<vmem>>, %arg6: memref<256x128xf32, #tpu.memory_space<vmem>>, %arg7: memref<1x128xf32, #tpu.memory_space<vmem>>, %arg8: memref<128x128xf32, #tpu.memory_space<vmem>>, %arg9: memref<1x128xf32, #tpu.memory_space<vmem>>, %arg10: memref<8x128xf32, #tpu.memory_space<vmem>>) attributes {dimension_semantics = [#tpu.dimension_semantics<parallel>], iteration_bounds = array<i64: 1>, scalar_prefetch = 0 : i64, scratch_operands = 0 : i64, tpu.core_type = #tpu.core_type<tc>, window_params = [{transform_indices = @transform_0, window_bounds = array<i64: 8, 128>}, {pipeline_mode = #tpu.pipeline_mode<synchronous>, transform_indices = @transform_1, window_bounds = array<i64: 128, 512>}, {pipeline_mode = #tpu.pipeline_mode<synchronous>, transform_indices = @transform_2, window_bounds = array<i64: 1, 512>}, {pipeline_mode = #tpu.pipeline_mode<synchronous>, transform_indices = @transform_3, window_bounds = array<i64: 512, 256>}, {pipeline_mode = #tpu.pipeline_mode<synchronous>, transform_indices = @transform_4, window_bounds = array<i64: 1, 256>}, {pipeline_mode = #tpu.pipeline_mode<synchronous>, transform_indices = @transform_5, window_bounds = array<i64: 256, 128>}, {pipeline_mode = #tpu.pipeline_mode<synchronous>, transform_indices = @transform_6, window_bounds = array<i64: 1, 128>}, {pipeline_mode = #tpu.pipeline_mode<synchronous>, transform_indices = @transform_7, window_bounds = array<i64: 128, 128>}, {pipeline_mode = #tpu.pipeline_mode<synchronous>, transform_indices = @transform_8, window_bounds = array<i64: 1, 128>}, {transform_indices = @transform_9, window_bounds = array<i64: 8, 128>}]} {
    %c0 = arith.constant 0 : index
    %c0_0 = arith.constant 0 : index
    %0 = vector.load %arg1[%c0, %c0_0] : memref<8x128xf32, #tpu.memory_space<vmem>>, vector<8x128xf32>
    %c0_1 = arith.constant 0 : index
    %c0_2 = arith.constant 0 : index
    %1 = vector.load %arg2[%c0_1, %c0_2] : memref<128x512xf32, #tpu.memory_space<vmem>>, vector<128x512xf32>
    %cst = arith.constant dense<0.000000e+00> : vector<8x512xf32>
    %2 = tpu.matmul %0, %1, %cst {dimension_numbers = #tpu.dot_dimension_numbers<[1], [0], [0], [1], [0, 0, 1, 1], [], []>} : vector<8x128xf32>, vector<128x512xf32>, vector<8x512xf32> -> vector<8x512xf32>
    %c0_3 = arith.constant 0 : index
    %c0_4 = arith.constant 0 : index
    %3 = vector.load %arg3[%c0_3, %c0_4] : memref<1x512xf32, #tpu.memory_space<vmem>>, vector<1x512xf32>
    %4 = vector.broadcast %3 : vector<1x512xf32> to vector<8x512xf32>
    %5 = arith.addf %2, %4 : vector<8x512xf32>
    %cst_5 = arith.constant 0.000000e+00 : f32
    %6 = vector.broadcast %cst_5 : f32 to vector<8x512xf32>
    %7 = arith.maximumf %5, %6 : vector<8x512xf32>
    %c0_6 = arith.constant 0 : index
    %c0_7 = arith.constant 0 : index
    %8 = vector.load %arg4[%c0_6, %c0_7] : memref<512x256xf32, #tpu.memory_space<vmem>>, vector<512x256xf32>
    %cst_8 = arith.constant dense<0.000000e+00> : vector<8x256xf32>
    %9 = tpu.matmul %7, %8, %cst_8 {dimension_numbers = #tpu.dot_dimension_numbers<[1], [0], [0], [1], [0, 0, 1, 1], [], []>} : vector<8x512xf32>, vector<512x256xf32>, vector<8x256xf32> -> vector<8x256xf32>
    %c0_9 = arith.constant 0 : index
    %c0_10 = arith.constant 0 : index
    %10 = vector.load %arg5[%c0_9, %c0_10] : memref<1x256xf32, #tpu.memory_space<vmem>>, vector<1x256xf32>
    %11 = vector.broadcast %10 : vector<1x256xf32> to vector<8x256xf32>
    %12 = arith.addf %9, %11 : vector<8x256xf32>
    %cst_11 = arith.constant 0.000000e+00 : f32
    %13 = vector.broadcast %cst_11 : f32 to vector<8x256xf32>
    %14 = arith.maximumf %12, %13 : vector<8x256xf32>
    %c0_12 = arith.constant 0 : index
    %c0_13 = arith.constant 0 : index
    %15 = vector.load %arg6[%c0_12, %c0_13] : memref<256x128xf32, #tpu.memory_space<vmem>>, vector<256x128xf32>
    %cst_14 = arith.constant dense<0.000000e+00> : vector<8x128xf32>
    %16 = tpu.matmul %14, %15, %cst_14 {dimension_numbers = #tpu.dot_dimension_numbers<[1], [0], [0], [1], [0, 0, 1, 1], [], []>} : vector<8x256xf32>, vector<256x128xf32>, vector<8x128xf32> -> vector<8x128xf32>
    %c0_15 = arith.constant 0 : index
    %c0_16 = arith.constant 0 : index
    %17 = vector.load %arg7[%c0_15, %c0_16] : memref<1x128xf32, #tpu.memory_space<vmem>>, vector<1x128xf32>
    %18 = vector.broadcast %17 : vector<1x128xf32> to vector<8x128xf32>
    %19 = arith.addf %16, %18 : vector<8x128xf32>
    %cst_17 = arith.constant 0.000000e+00 : f32
    %20 = vector.broadcast %cst_17 : f32 to vector<8x128xf32>
    %21 = arith.maximumf %19, %20 : vector<8x128xf32>
    %c0_18 = arith.constant 0 : index
    %c0_19 = arith.constant 0 : index
    %22 = vector.load %arg8[%c0_18, %c0_19] : memref<128x128xf32, #tpu.memory_space<vmem>>, vector<128x128xf32>
    %cst_20 = arith.constant dense<0.000000e+00> : vector<8x128xf32>
    %23 = tpu.matmul %21, %22, %cst_20 {dimension_numbers = #tpu.dot_dimension_numbers<[1], [0], [0], [1], [0, 0, 1, 1], [], []>} : vector<8x128xf32>, vector<128x128xf32>, vector<8x128xf32> -> vector<8x128xf32>
    %c0_21 = arith.constant 0 : index
    %c0_22 = arith.constant 0 : index
    %24 = vector.load %arg9[%c0_21, %c0_22] : memref<1x128xf32, #tpu.memory_space<vmem>>, vector<1x128xf32>
    %25 = vector.broadcast %24 : vector<1x128xf32> to vector<8x128xf32>
    %26 = arith.addf %23, %25 : vector<8x128xf32>
    %c0_23 = arith.constant 0 : index
    %c0_24 = arith.constant 0 : index
    %27 = vector.load %arg10[%c0_23, %c0_24] : memref<8x128xf32, #tpu.memory_space<vmem>>, vector<8x128xf32>
    tpu.vector_store %arg10[%c0_23, %c0_24], %26 {strides = array<i32>} : memref<8x128xf32, #tpu.memory_space<vmem>>, vector<8x128xf32>,
    return
  }
  func.func @transform_0(%arg0: i32) -> (i32, i32) {
    %c0_i32 = arith.constant 0 : i32
    %c0_i32_0 = arith.constant 0 : i32
    return %arg0, %c0_i32 : i32, i32
  }
  func.func @transform_1(%arg0: i32) -> (i32, i32) {
    %c0_i32 = arith.constant 0 : i32
    %c0_i32_0 = arith.constant 0 : i32
    %c0_i32_1 = arith.constant 0 : i32
    return %c0_i32, %c0_i32_0 : i32, i32
  }
  func.func @transform_2(%arg0: i32) -> (i32, i32) {
    %c0_i32 = arith.constant 0 : i32
    %c0_i32_0 = arith.constant 0 : i32
    %c0_i32_1 = arith.constant 0 : i32
    return %c0_i32, %c0_i32_0 : i32, i32
  }
  func.func @transform_3(%arg0: i32) -> (i32, i32) {
    %c0_i32 = arith.constant 0 : i32
    %c0_i32_0 = arith.constant 0 : i32
    %c0_i32_1 = arith.constant 0 : i32
    return %c0_i32, %c0_i32_0 : i32, i32
  }
  func.func @transform_4(%arg0: i32) -> (i32, i32) {
    %c0_i32 = arith.constant 0 : i32
    %c0_i32_0 = arith.constant 0 : i32
    %c0_i32_1 = arith.constant 0 : i32
    return %c0_i32, %c0_i32_0 : i32, i32
  }
  func.func @transform_5(%arg0: i32) -> (i32, i32) {
    %c0_i32 = arith.constant 0 : i32
    %c0_i32_0 = arith.constant 0 : i32
    %c0_i32_1 = arith.constant 0 : i32
    return %c0_i32, %c0_i32_0 : i32, i32
  }
  func.func @transform_6(%arg0: i32) -> (i32, i32) {
    %c0_i32 = arith.constant 0 : i32
    %c0_i32_0 = arith.constant 0 : i32
    %c0_i32_1 = arith.constant 0 : i32
    return %c0_i32, %c0_i32_0 : i32, i32
  }
  func.func @transform_7(%arg0: i32) -> (i32, i32) {
    %c0_i32 = arith.constant 0 : i32
    %c0_i32_0 = arith.constant 0 : i32
    %c0_i32_1 = arith.constant 0 : i32
    return %c0_i32, %c0_i32_0 : i32, i32
  }
  func.func @transform_8(%arg0: i32) -> (i32, i32) {
    %c0_i32 = arith.constant 0 : i32
    %c0_i32_0 = arith.constant 0 : i32
    %c0_i32_1 = arith.constant 0 : i32
    return %c0_i32, %c0_i32_0 : i32, i32
  }
  func.func @transform_9(%arg0: i32) -> (i32, i32) {
    %c0_i32 = arith.constant 0 : i32
    %c0_i32_0 = arith.constant 0 : i32
    return %arg0, %c0_i32 : i32, i32
  }
}

</mosaic_0001>

<llo_original>
// kernel: bddqn_forward.1
$region0: #{bddqn_forward.1}
  #allocation0 [shape = 'u32[]', space=smem, size = 0x4, offset = 0x4, fixed_abs, tag = 'smem constant byte address 0x4 - core index']
  #allocation1 [shape = 'u32[144,128]{1,0:T(1,128)}', space=vmem, size = 0x12000, scoped, tag = 'internal scratch']
  %s0 = inlined_call_operand.vmem [shape: f32[8,128], index: 0, kind: input, shape index: {}]
  %s1 = inlined_call_operand.hbm [shape: f32[128,512], index: 1, kind: input, shape index: {}]
  %s2 = inlined_call_operand.vmem [shape: f32[1,512], index: 2, kind: input, shape index: {}]
  %s3 = inlined_call_operand.hbm [shape: f32[512,256], index: 3, kind: input, shape index: {}]
  %s4 = inlined_call_operand.vmem [shape: f32[1,256], index: 4, kind: input, shape index: {}]
  %s5 = inlined_call_operand.hbm [shape: f32[256,128], index: 5, kind: input, shape index: {}]
  %s6 = inlined_call_operand.vmem [shape: f32[1,128], index: 6, kind: input, shape index: {}]
  %s7 = inlined_call_operand.hbm [shape: f32[128,128], index: 7, kind: input, shape index: {}]
  %s8 = inlined_call_operand.vmem [shape: f32[1,128], index: 8, kind: input, shape index: {}]
  %s9 = inlined_call_operand.vmem [shape: f32[8,128], index: 9, kind: output, shape index: {}]
  %s10 = sld [smem:[#allocation0]]
  $region62: #{bddqn_forward.1} parent=0
    _
  %s12 = ssub.s32 1, %s10
  %s13 = scalar_select 0, %s12, %s10
  $region1: #{bddqn_forward.1} parent=0
    #allocation2 [shape = 'u8[262144]{0}', space=vmem, size = 0x40000, scoped, tag = 'input window, operand 1, single buffered']
    #allocation3 [shape = 's32[1]{0}', space=sflag, size = 0x4, scoped, tag = 'scoped memory for bddqn_forward.1']
    #allocation4 [shape = 'u8[524288]{0}', space=vmem, size = 0x80000, scoped, tag = 'input window, operand 3, single buffered']
    #allocation5 [shape = 's32[1]{0}', space=sflag, size = 0x4, scoped, tag = 'scoped memory for bddqn_forward.1']
    #allocation6 [shape = 'u8[131072]{0}', space=vmem, size = 0x20000, scoped, tag = 'input window, operand 5, single buffered']
    #allocation7 [shape = 'u8[65536]{0}', space=vmem, size = 0x10000, scoped, tag = 'input window, operand 7, single buffered']
    #allocation8 [shape = 's32[1]{0}', space=sflag, size = 0x4, scoped, tag = 'scoped memory for bddqn_forward.1']
    %14 = vsyncpa [#allocation3], 0
    %15 = vsyncpa [#allocation5], 0
    %16 = vsyncpa [#allocation8], 0
    // Predicated region
    $region2: #{bddqn_forward.1} parent=1 // pred_check
      _
    $region3: #{bddqn_forward.1} parent=1 // pred_check_branch
      %18 = sbr.rel (0) target = $region5
    $region4: #{bddqn_forward.1} parent=1 // pred_region
      _
    $region5: #{bddqn_forward.1} parent=1 // pred_fallthru
      _
    // Predicated region
    $region6: #{bddqn_forward.1} parent=1 // pred_check
      _
    $region7: #{bddqn_forward.1} parent=1 // pred_check_branch
      %20 = sbr.rel (0) target = $region9
    $region8: #{bddqn_forward.1} parent=1 // pred_region
      %s22 = ssub.s32 8192, 8192
      %23 = vsyncadd [#allocation3], %s22
      %s24 = sshll.u32 [#allocation2], 4
      %s25 = int_to_ptr.vmem [resolvable:$true] %s24
      %30 = dma.hbm_to_vmem [thread:$0]  %s1, 8192, %s25, [#allocation3], 512, 512, 32
    $region9: #{bddqn_forward.1} parent=1 // pred_fallthru
      _
    // Predicated region
    $region10: #{bddqn_forward.1} parent=1 // pred_check
      _
    $region11: #{bddqn_forward.1} parent=1 // pred_check_branch
      %32 = sbr.rel (0) target = $region13
    $region12: #{bddqn_forward.1} parent=1 // pred_region
      _
    $region13: #{bddqn_forward.1} parent=1 // pred_fallthru
      _
    // Predicated region
    $region14: #{bddqn_forward.1} parent=1 // pred_check
      _
    $region15: #{bddqn_forward.1} parent=1 // pred_check_branch
      %34 = sbr.rel (0) target = $region17
    $region16: #{bddqn_forward.1} parent=1 // pred_region
      %s36 = ssub.s32 16384, 16384
      %37 = vsyncadd [#allocation5], %s36
      %s38 = sshll.u32 [#allocation4], 4
      %s39 = int_to_ptr.vmem [resolvable:$true] %s38
      %44 = dma.hbm_to_vmem [thread:$0]  %s3, 16384, %s39, [#allocation5], 256, 256, 16
    $region17: #{bddqn_forward.1} parent=1 // pred_fallthru
      _
    // Predicated region
    $region18: #{bddqn_forward.1} parent=1 // pred_check
      _
    $region19: #{bddqn_forward.1} parent=1 // pred_check_branch
      %46 = sbr.rel (0) target = $region21
    $region20: #{bddqn_forward.1} parent=1 // pred_region
      _
    $region21: #{bddqn_forward.1} parent=1 // pred_fallthru
      _
    // Predicated region
    $region22: #{bddqn_forward.1} parent=1 // pred_check
      _
    $region23: #{bddqn_forward.1} parent=1 // pred_check_branch
      %48 = sbr.rel (0) target = $region25
    $region24: #{bddqn_forward.1} parent=1 // pred_region
      %s50 = ssub.s32 4096, 4096
      %51 = vsyncadd [#allocation5], %s50
      %s52 = sshll.u32 [#allocation6], 4
      %s53 = int_to_ptr.vmem [resolvable:$true] %s52
      %58 = dma.hbm_to_vmem [thread:$0]  %s5, 4096, %s53, [#allocation5], 128, 128, 8
    $region25: #{bddqn_forward.1} parent=1 // pred_fallthru
      _
    // Predicated region
    $region26: #{bddqn_forward.1} parent=1 // pred_check
      _
    $region27: #{bddqn_forward.1} parent=1 // pred_check_branch
      %60 = sbr.rel (0) target = $region29
    $region28: #{bddqn_forward.1} parent=1 // pred_region
      _
    $region29: #{bddqn_forward.1} parent=1 // pred_fallthru
      _
    // Predicated region
    $region30: #{bddqn_forward.1} parent=1 // pred_check
      _
    $region31: #{bddqn_forward.1} parent=1 // pred_check_branch
      %62 = sbr.rel (0) target = $region33
    $region32: #{bddqn_forward.1} parent=1 // pred_region
      %s64 = ssub.s32 2048, 2048
      %65 = vsyncadd [#allocation8], %s64
      %s66 = sshll.u32 [#allocation7], 4
      %s67 = int_to_ptr.vmem [resolvable:$true] %s66
      %72 = dma.hbm_to_vmem [thread:$0]  %s7, 2048, %s67, [#allocation8], 128, 128, 8
    $region33: #{bddqn_forward.1} parent=1 // pred_fallthru
      _
    // Predicated region
    $region34: #{bddqn_forward.1} parent=1 // pred_check
      _
    $region35: #{bddqn_forward.1} parent=1 // pred_check_branch
      %74 = sbr.rel (0) target = $region37
    $region36: #{bddqn_forward.1} parent=1 // pred_region
      _
    $region37: #{bddqn_forward.1} parent=1 // pred_fallthru
      _
    // Predicated region
    $region38: #{bddqn_forward.1} parent=1 // pred_check
      _
    $region39: #{bddqn_forward.1} parent=1 // pred_check_branch
      %76 = sbr.rel (0) target = $region41
    $region40: #{bddqn_forward.1} parent=1 // pred_region
      %77 = dma.done [#allocation3], 8192
    $region41: #{bddqn_forward.1} parent=1 // pred_fallthru
      _
    // Predicated region
    $region42: #{bddqn_forward.1} parent=1 // pred_check
      _
    $region43: #{bddqn_forward.1} parent=1 // pred_check_branch
      %79 = sbr.rel (0) target = $region45
    $region44: #{bddqn_forward.1} parent=1 // pred_region
      %80 = dma.done [#allocation5], 16384
    $region45: #{bddqn_forward.1} parent=1 // pred_fallthru
      _
    // Predicated region
    $region46: #{bddqn_forward.1} parent=1 // pred_check
      _
    $region47: #{bddqn_forward.1} parent=1 // pred_check_branch
      %82 = sbr.rel (0) target = $region49
    $region48: #{bddqn_forward.1} parent=1 // pred_region
      %83 = dma.done [#allocation5], 4096
    $region49: #{bddqn_forward.1} parent=1 // pred_fallthru
      _
    // Predicated region
    $region50: #{bddqn_forward.1} parent=1 // pred_check
      _
    $region51: #{bddqn_forward.1} parent=1 // pred_check_branch
      %85 = sbr.rel (0) target = $region53
    $region52: #{bddqn_forward.1} parent=1 // pred_region
      %86 = dma.done [#allocation8], 2048
    $region53: #{bddqn_forward.1} parent=1 // pred_fallthru
      _
    %v87 = vld [vmem:[%s0] sm:$0xff]
    %v88 = vld [vmem:[#allocation2] sm:$0xff]
    %v89 = vld [vmem:[#allocation2 + $0x8] sm:$0xff]
    %v90 = vld [vmem:[#allocation2 + $0x10] sm:$0xff]
    %v91 = vld [vmem:[#allocation2 + $0x18] sm:$0xff]
    %v92 = vld [vmem:[#allocation2 + $0x20] sm:$0xff]
    %v93 = vld [vmem:[#allocation2 + $0x28] sm:$0xff]
    %v94 = vld [vmem:[#allocation2 + $0x30] sm:$0xff]
    %v95 = vld [vmem:[#allocation2 + $0x38] sm:$0xff]
    %v96 = vld [vmem:[#allocation2 + $0x40] sm:$0xff]
    %v97 = vld [vmem:[#allocation2 + $0x48] sm:$0xff]
    %v98 = vld [vmem:[#allocation2 + $0x50] sm:$0xff]
    %v99 = vld [vmem:[#allocation2 + $0x58] sm:$0xff]
    %v100 = vld [vmem:[#allocation2 + $0x60] sm:$0xff]
    %v101 = vld [vmem:[#allocation2 + $0x68] sm:$0xff]
    %v102 = vld [vmem:[#allocation2 + $0x70] sm:$0xff]
    %v103 = vld [vmem:[#allocation2 + $0x78] sm:$0xff]
    %v104 = vld [vmem:[#allocation2 + $0x80] sm:$0xff]
    %v105 = vld [vmem:[#allocation2 + $0x88] sm:$0xff]
    %v106 = vld [vmem:[#allocation2 + $0x90] sm:$0xff]
    %v107 = vld [vmem:[#allocation2 + $0x98] sm:$0xff]
    %v108 = vld [vmem:[#allocation2 + $0xa0] sm:$0xff]
    %v109 = vld [vmem:[#allocation2 + $0xa8] sm:$0xff]
    %v110 = vld [vmem:[#allocation2 + $0xb0] sm:$0xff]
    %v111 = vld [vmem:[#allocation2 + $0xb8] sm:$0xff]
    %v112 = vld [vmem:[#allocation2 + $0xc0] sm:$0xff]
    %v113 = vld [vmem:[#allocation2 + $0xc8] sm:$0xff]
    %v114 = vld [vmem:[#allocation2 + $0xd0] sm:$0xff]
    %v115 = vld [vmem:[#allocation2 + $0xd8] sm:$0xff]
    %v116 = vld [vmem:[#allocation2 + $0xe0] sm:$0xff]
    %v117 = vld [vmem:[#allocation2 + $0xe8] sm:$0xff]
    %v118 = vld [vmem:[#allocation2 + $0xf0] sm:$0xff]
    %v119 = vld [vmem:[#allocation2 + $0xf8] sm:$0xff]
    %v120 = vld [vmem:[#allocation2 + $0x100] sm:$0xff]
    %v121 = vld [vmem:[#allocation2 + $0x108] sm:$0xff]
    %v122 = vld [vmem:[#allocation2 + $0x110] sm:$0xff]
    %v123 = vld [vmem:[#allocation2 + $0x118] sm:$0xff]
    %v124 = vld [vmem:[#allocation2 + $0x120] sm:$0xff]
    %v125 = vld [vmem:[#allocation2 + $0x128] sm:$0xff]
    %v126 = vld [vmem:[#allocation2 + $0x130] sm:$0xff]
    %v127 = vld [vmem:[#allocation2 + $0x138] sm:$0xff]
    %v128 = vld [vmem:[#allocation2 + $0x140] sm:$0xff]
    %v129 = vld [vmem:[#allocation2 + $0x148] sm:$0xff]
    %v130 = vld [vmem:[#allocation2 + $0x150] sm:$0xff]
    %v131 = vld [vmem:[#allocation2 + $0x158] sm:$0xff]
    %v132 = vld [vmem:[#allocation2 + $0x160] sm:$0xff]
    %v133 = vld [vmem:[#allocation2 + $0x168] sm:$0xff]
    %v134 = vld [vmem:[#allocation2 + $0x170] sm:$0xff]
    %v135 = vld [vmem:[#allocation2 + $0x178] sm:$0xff]
    %v136 = vld [vmem:[#allocation2 + $0x180] sm:$0xff]
    %v137 = vld [vmem:[#allocation2 + $0x188] sm:$0xff]
    %v138 = vld [vmem:[#allocation2 + $0x190] sm:$0xff]
    %v139 = vld [vmem:[#allocation2 + $0x198] sm:$0xff]
    %v140 = vld [vmem:[#allocation2 + $0x1a0] sm:$0xff]
    %v141 = vld [vmem:[#allocation2 + $0x1a8] sm:$0xff]
    %v142 = vld [vmem:[#allocation2 + $0x1b0] sm:$0xff]
    %v143 = vld [vmem:[#allocation2 + $0x1b8] sm:$0xff]
    %v144 = vld [vmem:[#allocation2 + $0x1c0] sm:$0xff]
    %v145 = vld [vmem:[#allocation2 + $0x1c8] sm:$0xff]
    %v146 = vld [vmem:[#allocation2 + $0x1d0] sm:$0xff]
    %v147 = vld [vmem:[#allocation2 + $0x1d8] sm:$0xff]
    %v148 = vld [vmem:[#allocation2 + $0x1e0] sm:$0xff]
    %v149 = vld [vmem:[#allocation2 + $0x1e8] sm:$0xff]
    %v150 = vld [vmem:[#allocation2 + $0x1f0] sm:$0xff]
    %v151 = vld [vmem:[#allocation2 + $0x1f8] sm:$0xff]
    %v152 = vld [vmem:[%s2] sm:$0xf]
    %v154 = vlaneseq
    %v155 = vshrl.u32 %v154, 7
    %v156 = vsub.s32 0, %v155
    %v157 = vrot.slane %v152, %v156
    %v158 = vlaneseq
    %v159 = vshrl.u32 %v158, 7
    %v160 = vsub.s32 1, %v159
    %v161 = vrot.slane %v152, %v160
    %v162 = vlaneseq
    %v163 = vshrl.u32 %v162, 7
    %v164 = vsub.s32 2, %v163
    %v165 = vrot.slane %v152, %v164
    %v166 = vlaneseq
    %v167 = vshrl.u32 %v166, 7
    %v168 = vsub.s32 3, %v167
    %v169 = vrot.slane %v152, %v168
    %174 = vmatprep.subr.mxu0 %v89
    %175 = vmatpush1.msra.mxu0 %v88
    %176 = vmatprep.subr.mxu0 %v93
    %177 = vmatpush1.msra.mxu0 %v92
    %178 = vmatprep.subr.mxu0 %v97
    %179 = vmatpush1.msra.mxu0 %v96
    %180 = vmatprep.subr.mxu0 %v101
    %181 = vmatpush1.msra.mxu0 %v100
    %182 = vmatprep.subr.mxu0 %v105
    %183 = vmatpush1.msra.mxu0 %v104
    %184 = vmatprep.subr.mxu0 %v109
    %185 = vmatpush1.msra.mxu0 %v108
    %186 = vmatprep.subr.mxu0 %v113
    %187 = vmatpush1.msra.mxu0 %v112
    %188 = vmatprep.subr.mxu0 %v117
    %189 = vmatpush1.msra.mxu0 %v116
    %190 = vmatprep.subr.mxu0 %v121
    %191 = vmatpush1.msra.mxu0 %v120
    %192 = vmatprep.subr.mxu0 %v125
    %193 = vmatpush1.msra.mxu0 %v124
    %194 = vmatprep.subr.mxu0 %v129
    %195 = vmatpush1.msra.mxu0 %v128
    %196 = vmatprep.subr.mxu0 %v133
    %197 = vmatpush1.msra.mxu0 %v132
    %198 = vmatprep.subr.mxu0 %v137
    %199 = vmatpush1.msra.mxu0 %v136
    %200 = vmatprep.subr.mxu0 %v141
    %201 = vmatpush1.msra.mxu0 %v140
    %202 = vmatprep.subr.mxu0 %v145
    %203 = vmatpush1.msra.mxu0 %v144
    %204 = vmatprep.subr.mxu0 %v149
    %205 = vmatpush1.msra.mxu0 %v148
    %206 = vmatprep.subr.mxu0 0.0
    %207 = vmatpush1.msra.mxu0 0.0
    %208 = vmatprep.subr.mxu0 0.0
    %209 = vmatpush1.msra.mxu0 0.0
    %210 = vmatprep.subr.mxu0 0.0
    %211 = vmatpush1.msra.mxu0 0.0
    %212 = vmatprep.subr.mxu0 0.0
    %213 = vmatpush1.msra.mxu0 0.0
    %214 = vmatprep.subr.mxu0 0.0
    %215 = vmatpush1.msra.mxu0 0.0
    %216 = vmatprep.subr.mxu0 0.0
    %217 = vmatpush1.msra.mxu0 0.0
    %218 = vmatprep.subr.mxu0 0.0
    %219 = vmatpush1.msra.mxu0 0.0
    %220 = vmatprep.subr.mxu0 0.0
    %221 = vmatpush1.msra.mxu0 0.0
    %222 = vmatprep.subr.mxu0 0.0
    %223 = vmatpush1.msra.mxu0 0.0
    %224 = vmatprep.subr.mxu0 0.0
    %225 = vmatpush1.msra.mxu0 0.0
    %226 = vmatprep.subr.mxu0 0.0
    %227 = vmatpush1.msra.mxu0 0.0
    %228 = vmatprep.subr.mxu0 0.0
    %229 = vmatpush1.msra.mxu0 0.0
    %230 = vmatprep.subr.mxu0 0.0
    %231 = vmatpush1.msra.mxu0 0.0
    %232 = vmatprep.subr.mxu0 0.0
    %233 = vmatpush1.msra.mxu0 0.0
    %234 = vmatprep.subr.mxu0 0.0
    %235 = vmatpush1.msra.mxu0 0.0
    %236 = vmatprep.subr.mxu0 0.0
    %237 = vmatpush1.msra.mxu0 0.0
    %238 = vmatprep.mubr.f32.mxu0 0.0
    %239 = vmatmul.mubr.f32.gmra.mrb[0].mxu0 %v87
    %v240 = vpop.f32.mrb[0].mxu0
    %v241 = vadd.f32 %v157, %v240
    %v242 = vpop.f32.mrb[0].mxu0
    %v243 = vadd.f32 %v161, %v242
    %244 = vdwg.mxu0
    %245 = vmatprep.subr.mxu0 %v91
    %246 = vmatpush1.msra.mxu0 %v90
    %247 = vmatprep.subr.mxu0 %v95
    %248 = vmatpush1.msra.mxu0 %v94
    %249 = vmatprep.subr.mxu0 %v99
    %250 = vmatpush1.msra.mxu0 %v98
    %251 = vmatprep.subr.mxu0 %v103
    %252 = vmatpush1.msra.mxu0 %v102
    %253 = vmatprep.subr.mxu0 %v107
    %254 = vmatpush1.msra.mxu0 %v106
    %255 = vmatprep.subr.mxu0 %v111
    %256 = vmatpush1.msra.mxu0 %v110
    %257 = vmatprep.subr.mxu0 %v115
    %258 = vmatpush1.msra.mxu0 %v114
    %259 = vmatprep.subr.mxu0 %v119
    %260 = vmatpush1.msra.mxu0 %v118
    %261 = vmatprep.subr.mxu0 %v123
    %262 = vmatpush1.msra.mxu0 %v122
    %263 = vmatprep.subr.mxu0 %v127
    %264 = vmatpush1.msra.mxu0 %v126
    %265 = vmatprep.subr.mxu0 %v131
    %266 = vmatpush1.msra.mxu0 %v130
    %267 = vmatprep.subr.mxu0 %v135
    %268 = vmatpush1.msra.mxu0 %v134
    %269 = vmatprep.subr.mxu0 %v139
    %270 = vmatpush1.msra.mxu0 %v138
    %271 = vmatprep.subr.mxu0 %v143
    %272 = vmatpush1.msra.mxu0 %v142
    %273 = vmatprep.subr.mxu0 %v147
    %274 = vmatpush1.msra.mxu0 %v146
    %275 = vmatprep.subr.mxu0 %v151
    %276 = vmatpush1.msra.mxu0 %v150
    %277 = vmatprep.subr.mxu0 0.0
    %278 = vmatpush1.msra.mxu0 0.0
    %279 = vmatprep.subr.mxu0 0.0
    %280 = vmatpush1.msra.mxu0 0.0
    %281 = vmatprep.subr.mxu0 0.0
    %282 = vmatpush1.msra.mxu0 0.0
    %283 = vmatprep.subr.mxu0 0.0
    %284 = vmatpush1.msra.mxu0 0.0
    %285 = vmatprep.subr.mxu0 0.0
    %286 = vmatpush1.msra.mxu0 0.0
    %287 = vmatprep.subr.mxu0 0.0
    %288 = vmatpush1.msra.mxu0 0.0
    %289 = vmatprep.subr.mxu0 0.0
    %290 = vmatpush1.msra.mxu0 0.0
    %291 = vmatprep.subr.mxu0 0.0
    %292 = vmatpush1.msra.mxu0 0.0
    %293 = vmatprep.subr.mxu0 0.0
    %294 = vmatpush1.msra.mxu0 0.0
    %295 = vmatprep.subr.mxu0 0.0
    %296 = vmatpush1.msra.mxu0 0.0
    %297 = vmatprep.subr.mxu0 0.0
    %298 = vmatpush1.msra.mxu0 0.0
    %299 = vmatprep.subr.mxu0 0.0
    %300 = vmatpush1.msra.mxu0 0.0
    %301 = vmatprep.subr.mxu0 0.0
    %302 = vmatpush1.msra.mxu0 0.0
    %303 = vmatprep.subr.mxu0 0.0
    %304 = vmatpush1.msra.mxu0 0.0
    %305 = vmatprep.subr.mxu0 0.0
    %306 = vmatpush1.msra.mxu0 0.0
    %307 = vmatprep.subr.mxu0 0.0
    %308 = vmatpush1.msra.mxu0 0.0
    %309 = vmatprep.mubr.f32.mxu0 0.0
    %310 = vmatmul.mubr.f32.gmra.mrb[0].mxu0 %v87
    %v311 = vpop.f32.mrb[0].mxu0
    %v312 = vadd.f32 %v165, %v311
    %v313 = vpop.f32.mrb[0].mxu0
    %v314 = vadd.f32 %v169, %v313
    %315 = vdwg.mxu0
    %v316 = vmax.f32 %v241, 0.0
    %v317 = vmax.f32 %v243, 0.0
    %v318 = vmax.f32 %v312, 0.0
    %v319 = vmax.f32 %v314, 0.0
    %v320 = vld [vmem:[#allocation4] sm:$0xff]
    %v321 = vld [vmem:[#allocation4 + $0x8] sm:$0xff]
    %v322 = vld [vmem:[#allocation4 + $0x10] sm:$0xff]
    %v323 = vld [vmem:[#allocation4 + $0x18] sm:$0xff]
    %v324 = vld [vmem:[#allocation4 + $0x20] sm:$0xff]
    %v325 = vld [vmem:[#allocation4 + $0x28] sm:$0xff]
    %v326 = vld [vmem:[#allocation4 + $0x30] sm:$0xff]
    %v327 = vld [vmem:[#allocation4 + $0x38] sm:$0xff]
    %v328 = vld [vmem:[#allocation4 + $0x40] sm:$0xff]
    %v329 = vld [vmem:[#allocation4 + $0x48] sm:$0xff]
    %v330 = vld [vmem:[#allocation4 + $0x50] sm:$0xff]
    %v331 = vld [vmem:[#allocation4 + $0x58] sm:$0xff]
    %v332 = vld [vmem:[#allocation4 + $0x60] sm:$0xff]
    %v333 = vld [vmem:[#allocation4 + $0x68] sm:$0xff]
    %v334 = vld [vmem:[#allocation4 + $0x70] sm:$0xff]
    %v335 = vld [vmem:[#allocation4 + $0x78] sm:$0xff]
    %v336 = vld [vmem:[#allocation4 + $0x80] sm:$0xff]
    %v337 = vld [vmem:[#allocation4 + $0x88] sm:$0xff]
    %v338 = vld [vmem:[#allocation4 + $0x90] sm:$0xff]
    %v339 = vld [vmem:[#allocation4 + $0x98] sm:$0xff]
    %v340 = vld [vmem:[#allocation4 + $0xa0] sm:$0xff]
    %v341 = vld [vmem:[#allocation4 + $0xa8] sm:$0xff]
    %v342 = vld [vmem:[#allocation4 + $0xb0] sm:$0xff]
    %v343 = vld [vmem:[#allocation4 + $0xb8] sm:$0xff]
    %v344 = vld [vmem:[#allocation4 + $0xc0] sm:$0xff]
    %v345 = vld [vmem:[#allocation4 + $0xc8] sm:$0xff]
    %v346 = vld [vmem:[#allocation4 + $0xd0] sm:$0xff]
    %v347 = vld [vmem:[#allocation4 + $0xd8] sm:$0xff]
    %v348 = vld [vmem:[#allocation4 + $0xe0] sm:$0xff]
    %v349 = vld [vmem:[#allocation4 + $0xe8] sm:$0xff]
    %v350 = vld [vmem:[#allocation4 + $0xf0] sm:$0xff]
    %v351 = vld [vmem:[#allocation4 + $0xf8] sm:$0xff]
    %v352 = vld [vmem:[#allocation4 + $0x100] sm:$0xff]
    %v353 = vld [vmem:[#allocation4 + $0x108] sm:$0xff]
    %v354 = vld [vmem:[#allocation4 + $0x110] sm:$0xff]
    %v355 = vld [vmem:[#allocation4 + $0x118] sm:$0xff]
    %v356 = vld [vmem:[#allocation4 + $0x120] sm:$0xff]
    %v357 = vld [vmem:[#allocation4 + $0x128] sm:$0xff]
    %v358 = vld [vmem:[#allocation4 + $0x130] sm:$0xff]
    %v359 = vld [vmem:[#allocation4 + $0x138] sm:$0xff]
    %v360 = vld [vmem:[#allocation4 + $0x140] sm:$0xff]
    %v361 = vld [vmem:[#allocation4 + $0x148] sm:$0xff]
    %v362 = vld [vmem:[#allocation4 + $0x150] sm:$0xff]
    %v363 = vld [vmem:[#allocation4 + $0x158] sm:$0xff]
    %v364 = vld [vmem:[#allocation4 + $0x160] sm:$0xff]
    %v365 = vld [vmem:[#allocation4 + $0x168] sm:$0xff]
    %v366 = vld [vmem:[#allocation4 + $0x170] sm:$0xff]
    %v367 = vld [vmem:[#allocation4 + $0x178] sm:$0xff]
    %v368 = vld [vmem:[#allocation4 + $0x180] sm:$0xff]
    %v369 = vld [vmem:[#allocation4 + $0x188] sm:$0xff]
    %v370 = vld [vmem:[#allocation4 + $0x190] sm:$0xff]
    %v371 = vld [vmem:[#allocation4 + $0x198] sm:$0xff]
    %v372 = vld [vmem:[#allocation4 + $0x1a0] sm:$0xff]
    %v373 = vld [vmem:[#allocation4 + $0x1a8] sm:$0xff]
    %v374 = vld [vmem:[#allocation4 + $0x1b0] sm:$0xff]
    %v375 = vld [vmem:[#allocation4 + $0x1b8] sm:$0xff]
    %v376 = vld [vmem:[#allocation4 + $0x1c0] sm:$0xff]
    %v377 = vld [vmem:[#allocation4 + $0x1c8] sm:$0xff]
    %v378 = vld [vmem:[#allocation4 + $0x1d0] sm:$0xff]
    %v379 = vld [vmem:[#allocation4 + $0x1d8] sm:$0xff]
    %v380 = vld [vmem:[#allocation4 + $0x1e0] sm:$0xff]
    %v381 = vld [vmem:[#allocation4 + $0x1e8] sm:$0xff]
    %v382 = vld [vmem:[#allocation4 + $0x1f0] sm:$0xff]
    %v383 = vld [vmem:[#allocation4 + $0x1f8] sm:$0xff]
    %v384 = vld [vmem:[#allocation4 + $0x200] sm:$0xff]
    %v385 = vld [vmem:[#allocation4 + $0x208] sm:$0xff]
    %v386 = vld [vmem:[#allocation4 + $0x210] sm:$0xff]
    %v387 = vld [vmem:[#allocation4 + $0x218] sm:$0xff]
    %v388 = vld [vmem:[#allocation4 + $0x220] sm:$0xff]
    %v389 = vld [vmem:[#allocation4 + $0x228] sm:$0xff]
    %v390 = vld [vmem:[#allocation4 + $0x230] sm:$0xff]
    %v391 = vld [vmem:[#allocation4 + $0x238] sm:$0xff]
    %v392 = vld [vmem:[#allocation4 + $0x240] sm:$0xff]
    %v393 = vld [vmem:[#allocation4 + $0x248] sm:$0xff]
    %v394 = vld [vmem:[#allocation4 + $0x250] sm:$0xff]
    %v395 = vld [vmem:[#allocation4 + $0x258] sm:$0xff]
    %v396 = vld [vmem:[#allocation4 + $0x260] sm:$0xff]
    %v397 = vld [vmem:[#allocation4 + $0x268] sm:$0xff]
    %v398 = vld [vmem:[#allocation4 + $0x270] sm:$0xff]
    %v399 = vld [vmem:[#allocation4 + $0x278] sm:$0xff]
    %v400 = vld [vmem:[#allocation4 + $0x280] sm:$0xff]
    %v401 = vld [vmem:[#allocation4 + $0x288] sm:$0xff]
    %v402 = vld [vmem:[#allocation4 + $0x290] sm:$0xff]
    %v403 = vld [vmem:[#allocation4 + $0x298] sm:$0xff]
    %v404 = vld [vmem:[#allocation4 + $0x2a0] sm:$0xff]
    %v405 = vld [vmem:[#allocation4 + $0x2a8] sm:$0xff]
    %v406 = vld [vmem:[#allocation4 + $0x2b0] sm:$0xff]
    %v407 = vld [vmem:[#allocation4 + $0x2b8] sm:$0xff]
    %v408 = vld [vmem:[#allocation4 + $0x2c0] sm:$0xff]
    %v409 = vld [vmem:[#allocation4 + $0x2c8] sm:$0xff]
    %v410 = vld [vmem:[#allocation4 + $0x2d0] sm:$0xff]
    %v411 = vld [vmem:[#allocation4 + $0x2d8] sm:$0xff]
    %v412 = vld [vmem:[#allocation4 + $0x2e0] sm:$0xff]
    %v413 = vld [vmem:[#allocation4 + $0x2e8] sm:$0xff]
    %v414 = vld [vmem:[#allocation4 + $0x2f0] sm:$0xff]
    %v415 = vld [vmem:[#allocation4 + $0x2f8] sm:$0xff]
    %v416 = vld [vmem:[#allocation4 + $0x300] sm:$0xff]
    %v417 = vld [vmem:[#allocation4 + $0x308] sm:$0xff]
    %v418 = vld [vmem:[#allocation4 + $0x310] sm:$0xff]
    %v419 = vld [vmem:[#allocation4 + $0x318] sm:$0xff]
    %v420 = vld [vmem:[#allocation4 + $0x320] sm:$0xff]
    %v421 = vld [vmem:[#allocation4 + $0x328] sm:$0xff]
    %v422 = vld [vmem:[#allocation4 + $0x330] sm:$0xff]
    %v423 = vld [vmem:[#allocation4 + $0x338] sm:$0xff]
    %v424 = vld [vmem:[#allocation4 + $0x340] sm:$0xff]
    %v425 = vld [vmem:[#allocation4 + $0x348] sm:$0xff]
    %v426 = vld [vmem:[#allocation4 + $0x350] sm:$0xff]
    %v427 = vld [vmem:[#allocation4 + $0x358] sm:$0xff]
    %v428 = vld [vmem:[#allocation4 + $0x360] sm:$0xff]
    %v429 = vld [vmem:[#allocation4 + $0x368] sm:$0xff]
    %v430 = vld [vmem:[#allocation4 + $0x370] sm:$0xff]
    %v431 = vld [vmem:[#allocation4 + $0x378] sm:$0xff]
    %v432 = vld [vmem:[#allocation4 + $0x380] sm:$0xff]
    %v433 = vld [vmem:[#allocation4 + $0x388] sm:$0xff]
    %v434 = vld [vmem:[#allocation4 + $0x390] sm:$0xff]
    %v435 = vld [vmem:[#allocation4 + $0x398] sm:$0xff]
    %v436 = vld [vmem:[#allocation4 + $0x3a0] sm:$0xff]
    %v437 = vld [vmem:[#allocation4 + $0x3a8] sm:$0xff]
    %v438 = vld [vmem:[#allocation4 + $0x3b0] sm:$0xff]
    %v439 = vld [vmem:[#allocation4 + $0x3b8] sm:$0xff]
    %v440 = vld [vmem:[#allocation4 + $0x3c0] sm:$0xff]
    %v441 = vld [vmem:[#allocation4 + $0x3c8] sm:$0xff]
    %v442 = vld [vmem:[#allocation4 + $0x3d0] sm:$0xff]
    %v443 = vld [vmem:[#allocation4 + $0x3d8] sm:$0xff]
    %v444 = vld [vmem:[#allocation4 + $0x3e0] sm:$0xff]
    %v445 = vld [vmem:[#allocation4 + $0x3e8] sm:$0xff]
    %v446 = vld [vmem:[#allocation4 + $0x3f0] sm:$0xff]
    %v447 = vld [vmem:[#allocation4 + $0x3f8] sm:$0xff]
    %v448 = vld [vmem:[%s4] sm:$0x3]
    %v450 = vlaneseq
    %v451 = vshrl.u32 %v450, 7
    %v452 = vsub.s32 0, %v451
    %v453 = vrot.slane %v448, %v452
    %v454 = vlaneseq
    %v455 = vshrl.u32 %v454, 7
    %v456 = vsub.s32 1, %v455
    %v457 = vrot.slane %v448, %v456
    %460 = vmatprep.subr.mxu0 %v321
    %461 = vmatpush1.msra.mxu0 %v320
    %462 = vmatprep.subr.mxu0 %v323
    %463 = vmatpush1.msra.mxu0 %v322
    %464 = vmatprep.subr.mxu0 %v325
    %465 = vmatpush1.msra.mxu0 %v324
    %466 = vmatprep.subr.mxu0 %v327
    %467 = vmatpush1.msra.mxu0 %v326
    %468 = vmatprep.subr.mxu0 %v329
    %469 = vmatpush1.msra.mxu0 %v328
    %470 = vmatprep.subr.mxu0 %v331
    %471 = vmatpush1.msra.mxu0 %v330
    %472 = vmatprep.subr.mxu0 %v333
    %473 = vmatpush1.msra.mxu0 %v332
    %474 = vmatprep.subr.mxu0 %v335
    %475 = vmatpush1.msra.mxu0 %v334
    %476 = vmatprep.subr.mxu0 %v337
    %477 = vmatpush1.msra.mxu0 %v336
    %478 = vmatprep.subr.mxu0 %v339
    %479 = vmatpush1.msra.mxu0 %v338
    %480 = vmatprep.subr.mxu0 %v341
    %481 = vmatpush1.msra.mxu0 %v340
    %482 = vmatprep.subr.mxu0 %v343
    %483 = vmatpush1.msra.mxu0 %v342
    %484 = vmatprep.subr.mxu0 %v345
    %485 = vmatpush1.msra.mxu0 %v344
    %486 = vmatprep.subr.mxu0 %v347
    %487 = vmatpush1.msra.mxu0 %v346
    %488 = vmatprep.subr.mxu0 %v349
    %489 = vmatpush1.msra.mxu0 %v348
    %490 = vmatprep.subr.mxu0 %v351
    %491 = vmatpush1.msra.mxu0 %v350
    %492 = vmatprep.subr.mxu0 %v353
    %493 = vmatpush1.msra.mxu0 %v352
    %494 = vmatprep.subr.mxu0 %v355
    %495 = vmatpush1.msra.mxu0 %v354
    %496 = vmatprep.subr.mxu0 %v357
    %497 = vmatpush1.msra.mxu0 %v356
    %498 = vmatprep.subr.mxu0 %v359
    %499 = vmatpush1.msra.mxu0 %v358
    %500 = vmatprep.subr.mxu0 %v361
    %501 = vmatpush1.msra.mxu0 %v360
    %502 = vmatprep.subr.mxu0 %v363
    %503 = vmatpush1.msra.mxu0 %v362
    %504 = vmatprep.subr.mxu0 %v365
    %505 = vmatpush1.msra.mxu0 %v364
    %506 = vmatprep.subr.mxu0 %v367
    %507 = vmatpush1.msra.mxu0 %v366
    %508 = vmatprep.subr.mxu0 %v369
    %509 = vmatpush1.msra.mxu0 %v368
    %510 = vmatprep.subr.mxu0 %v371
    %511 = vmatpush1.msra.mxu0 %v370
    %512 = vmatprep.subr.mxu0 %v373
    %513 = vmatpush1.msra.mxu0 %v372
    %514 = vmatprep.subr.mxu0 %v375
    %515 = vmatpush1.msra.mxu0 %v374
    %516 = vmatprep.subr.mxu0 %v377
    %517 = vmatpush1.msra.mxu0 %v376
    %518 = vmatprep.subr.mxu0 %v379
    %519 = vmatpush1.msra.mxu0 %v378
    %520 = vmatprep.subr.mxu0 %v381
    %521 = vmatpush1.msra.mxu0 %v380
    %522 = vmatprep.subr.mxu0 %v383
    %523 = vmatpush1.msra.mxu0 %v382
    %524 = vmatprep.mubr.f32.mxu0 %v317
    %525 = vmatmul.mubr.f32.gmra.mrb[0].mxu0 %v316
    %v526 = vpop.f32.mrb[0].mxu0
    %v527 = vadd.f32 %v453, %v526
    %v528 = vpop.f32.mrb[0].mxu0
    %v529 = vadd.f32 %v457, %v528
    %530 = vdwg.mxu0
    %531 = vmatprep.subr.mxu0 %v385
    %532 = vmatpush1.msra.mxu0 %v384
    %533 = vmatprep.subr.mxu0 %v387
    %534 = vmatpush1.msra.mxu0 %v386
    %535 = vmatprep.subr.mxu0 %v389
    %536 = vmatpush1.msra.mxu0 %v388
    %537 = vmatprep.subr.mxu0 %v391
    %538 = vmatpush1.msra.mxu0 %v390
    %539 = vmatprep.subr.mxu0 %v393
    %540 = vmatpush1.msra.mxu0 %v392
    %541 = vmatprep.subr.mxu0 %v395
    %542 = vmatpush1.msra.mxu0 %v394
    %543 = vmatprep.subr.mxu0 %v397
    %544 = vmatpush1.msra.mxu0 %v396
    %545 = vmatprep.subr.mxu0 %v399
    %546 = vmatpush1.msra.mxu0 %v398
    %547 = vmatprep.subr.mxu0 %v401
    %548 = vmatpush1.msra.mxu0 %v400
    %549 = vmatprep.subr.mxu0 %v403
    %550 = vmatpush1.msra.mxu0 %v402
    %551 = vmatprep.subr.mxu0 %v405
    %552 = vmatpush1.msra.mxu0 %v404
    %553 = vmatprep.subr.mxu0 %v407
    %554 = vmatpush1.msra.mxu0 %v406
    %555 = vmatprep.subr.mxu0 %v409
    %556 = vmatpush1.msra.mxu0 %v408
    %557 = vmatprep.subr.mxu0 %v411
    %558 = vmatpush1.msra.mxu0 %v410
    %559 = vmatprep.subr.mxu0 %v413
    %560 = vmatpush1.msra.mxu0 %v412
    %561 = vmatprep.subr.mxu0 %v415
    %562 = vmatpush1.msra.mxu0 %v414
    %563 = vmatprep.subr.mxu0 %v417
    %564 = vmatpush1.msra.mxu0 %v416
    %565 = vmatprep.subr.mxu0 %v419
    %566 = vmatpush1.msra.mxu0 %v418
    %567 = vmatprep.subr.mxu0 %v421
    %568 = vmatpush1.msra.mxu0 %v420
    %569 = vmatprep.subr.mxu0 %v423
    %570 = vmatpush1.msra.mxu0 %v422
    %571 = vmatprep.subr.mxu0 %v425
    %572 = vmatpush1.msra.mxu0 %v424
    %573 = vmatprep.subr.mxu0 %v427
    %574 = vmatpush1.msra.mxu0 %v426
    %575 = vmatprep.subr.mxu0 %v429
    %576 = vmatpush1.msra.mxu0 %v428
    %577 = vmatprep.subr.mxu0 %v431
    %578 = vmatpush1.msra.mxu0 %v430
    %579 = vmatprep.subr.mxu0 %v433
    %580 = vmatpush1.msra.mxu0 %v432
    %581 = vmatprep.subr.mxu0 %v435
    %582 = vmatpush1.msra.mxu0 %v434
    %583 = vmatprep.subr.mxu0 %v437
    %584 = vmatpush1.msra.mxu0 %v436
    %585 = vmatprep.subr.mxu0 %v439
    %586 = vmatpush1.msra.mxu0 %v438
    %587 = vmatprep.subr.mxu0 %v441
    %588 = vmatpush1.msra.mxu0 %v440
    %589 = vmatprep.subr.mxu0 %v443
    %590 = vmatpush1.msra.mxu0 %v442
    %591 = vmatprep.subr.mxu0 %v445
    %592 = vmatpush1.msra.mxu0 %v444
    %593 = vmatprep.subr.mxu0 %v447
    %594 = vmatpush1.msra.mxu0 %v446
    %595 = vmatprep.mubr.f32.mxu0 %v319
    %596 = vmatmul.mubr.f32.gmra.mrb[0].mxu0 %v318
    %v597 = vpop.f32.mrb[0].mxu0
    %v598 = vadd.f32 %v527, %v597
    %v599 = vpop.f32.mrb[0].mxu0
    %v600 = vadd.f32 %v529, %v599
    %601 = vdwg.mxu0
    %v602 = vmax.f32 %v598, 0.0
    %v603 = vmax.f32 %v600, 0.0
    %v604 = vld [vmem:[#allocation6] sm:$0xff]
    %v605 = vld [vmem:[#allocation6 + $0x8] sm:$0xff]
    %v606 = vld [vmem:[#allocation6 + $0x10] sm:$0xff]
    %v607 = vld [vmem:[#allocation6 + $0x18] sm:$0xff]
    %v608 = vld [vmem:[#allocation6 + $0x20] sm:$0xff]
    %v609 = vld [vmem:[#allocation6 + $0x28] sm:$0xff]
    %v610 = vld [vmem:[#allocation6 + $0x30] sm:$0xff]
    %v611 = vld [vmem:[#allocation6 + $0x38] sm:$0xff]
    %v612 = vld [vmem:[#allocation6 + $0x40] sm:$0xff]
    %v613 = vld [vmem:[#allocation6 + $0x48] sm:$0xff]
    %v614 = vld [vmem:[#allocation6 + $0x50] sm:$0xff]
    %v615 = vld [vmem:[#allocation6 + $0x58] sm:$0xff]
    %v616 = vld [vmem:[#allocation6 + $0x60] sm:$0xff]
    %v617 = vld [vmem:[#allocation6 + $0x68] sm:$0xff]
    %v618 = vld [vmem:[#allocation6 + $0x70] sm:$0xff]
    %v619 = vld [vmem:[#allocation6 + $0x78] sm:$0xff]
    %v620 = vld [vmem:[#allocation6 + $0x80] sm:$0xff]
    %v621 = vld [vmem:[#allocation6 + $0x88] sm:$0xff]
    %v622 = vld [vmem:[#allocation6 + $0x90] sm:$0xff]
    %v623 = vld [vmem:[#allocation6 + $0x98] sm:$0xff]
    %v624 = vld [vmem:[#allocation6 + $0xa0] sm:$0xff]
    %v625 = vld [vmem:[#allocation6 + $0xa8] sm:$0xff]
    %v626 = vld [vmem:[#allocation6 + $0xb0] sm:$0xff]
    %v627 = vld [vmem:[#allocation6 + $0xb8] sm:$0xff]
    %v628 = vld [vmem:[#allocation6 + $0xc0] sm:$0xff]
    %v629 = vld [vmem:[#allocation6 + $0xc8] sm:$0xff]
    %v630 = vld [vmem:[#allocation6 + $0xd0] sm:$0xff]
    %v631 = vld [vmem:[#allocation6 + $0xd8] sm:$0xff]
    %v632 = vld [vmem:[#allocation6 + $0xe0] sm:$0xff]
    %v633 = vld [vmem:[#allocation6 + $0xe8] sm:$0xff]
    %v634 = vld [vmem:[#allocation6 + $0xf0] sm:$0xff]
    %v635 = vld [vmem:[#allocation6 + $0xf8] sm:$0xff]
    %v636 = vld [vmem:[%s6] sm:$0x1]
    %v638 = vlaneseq
    %v639 = vshrl.u32 %v638, 7
    %v640 = vsub.s32 0, %v639
    %v641 = vrot.slane %v636, %v640
    %643 = vmatprep.subr.mxu0 0.0
    %644 = vmatpush1.msra.mxu0 %v604
    %645 = vmatprep.subr.mxu0 0.0
    %646 = vmatpush1.msra.mxu0 %v605
    %647 = vmatprep.subr.mxu0 0.0
    %648 = vmatpush1.msra.mxu0 %v606
    %649 = vmatprep.subr.mxu0 0.0
    %650 = vmatpush1.msra.mxu0 %v607
    %651 = vmatprep.subr.mxu0 0.0
    %652 = vmatpush1.msra.mxu0 %v608
    %653 = vmatprep.subr.mxu0 0.0
    %654 = vmatpush1.msra.mxu0 %v609
    %655 = vmatprep.subr.mxu0 0.0
    %656 = vmatpush1.msra.mxu0 %v610
    %657 = vmatprep.subr.mxu0 0.0
    %658 = vmatpush1.msra.mxu0 %v611
    %659 = vmatprep.subr.mxu0 0.0
    %660 = vmatpush1.msra.mxu0 %v612
    %661 = vmatprep.subr.mxu0 0.0
    %662 = vmatpush1.msra.mxu0 %v613
    %663 = vmatprep.subr.mxu0 0.0
    %664 = vmatpush1.msra.mxu0 %v614
    %665 = vmatprep.subr.mxu0 0.0
    %666 = vmatpush1.msra.mxu0 %v615
    %667 = vmatprep.subr.mxu0 0.0
    %668 = vmatpush1.msra.mxu0 %v616
    %669 = vmatprep.subr.mxu0 0.0
    %670 = vmatpush1.msra.mxu0 %v617
    %671 = vmatprep.subr.mxu0 0.0
    %672 = vmatpush1.msra.mxu0 %v618
    %673 = vmatprep.subr.mxu0 0.0
    %674 = vmatpush1.msra.mxu0 %v619
    %675 = vmatprep.subr.mxu0 0.0
    %676 = vmatpush1.msra.mxu0 %v620
    %677 = vmatprep.subr.mxu0 0.0
    %678 = vmatpush1.msra.mxu0 %v621
    %679 = vmatprep.subr.mxu0 0.0
    %680 = vmatpush1.msra.mxu0 %v622
    %681 = vmatprep.subr.mxu0 0.0
    %682 = vmatpush1.msra.mxu0 %v623
    %683 = vmatprep.subr.mxu0 0.0
    %684 = vmatpush1.msra.mxu0 %v624
    %685 = vmatprep.subr.mxu0 0.0
    %686 = vmatpush1.msra.mxu0 %v625
    %687 = vmatprep.subr.mxu0 0.0
    %688 = vmatpush1.msra.mxu0 %v626
    %689 = vmatprep.subr.mxu0 0.0
    %690 = vmatpush1.msra.mxu0 %v627
    %691 = vmatprep.subr.mxu0 0.0
    %692 = vmatpush1.msra.mxu0 %v628
    %693 = vmatprep.subr.mxu0 0.0
    %694 = vmatpush1.msra.mxu0 %v629
    %695 = vmatprep.subr.mxu0 0.0
    %696 = vmatpush1.msra.mxu0 %v630
    %697 = vmatprep.subr.mxu0 0.0
    %698 = vmatpush1.msra.mxu0 %v631
    %699 = vmatprep.subr.mxu0 0.0
    %700 = vmatpush1.msra.mxu0 %v632
    %701 = vmatprep.subr.mxu0 0.0
    %702 = vmatpush1.msra.mxu0 %v633
    %703 = vmatprep.subr.mxu0 0.0
    %704 = vmatpush1.msra.mxu0 %v634
    %705 = vmatprep.subr.mxu0 0.0
    %706 = vmatpush1.msra.mxu0 %v635
    %707 = vmatprep.mubr.f32.mxu0 %v603
    %708 = vmatmul.mubr.f32.gmra.mrb[0].mxu0 %v602
    %v709 = vpop.f32.mrb[0].mxu0
    %v710 = vadd.f32 %v641, %v709
    %v711 = vpop.f32.mrb[0].mxu0
    %712 = vdwg.mxu0
    %v713 = vmax.f32 %v710, 0.0
    %v714 = vld [vmem:[#allocation7] sm:$0xff]
    %v715 = vld [vmem:[#allocation7 + $0x8] sm:$0xff]
    %v716 = vld [vmem:[#allocation7 + $0x10] sm:$0xff]
    %v717 = vld [vmem:[#allocation7 + $0x18] sm:$0xff]
    %v718 = vld [vmem:[#allocation7 + $0x20] sm:$0xff]
    %v719 = vld [vmem:[#allocation7 + $0x28] sm:$0xff]
    %v720 = vld [vmem:[#allocation7 + $0x30] sm:$0xff]
    %v721 = vld [vmem:[#allocation7 + $0x38] sm:$0xff]
    %v722 = vld [vmem:[#allocation7 + $0x40] sm:$0xff]
    %v723 = vld [vmem:[#allocation7 + $0x48] sm:$0xff]
    %v724 = vld [vmem:[#allocation7 + $0x50] sm:$0xff]
    %v725 = vld [vmem:[#allocation7 + $0x58] sm:$0xff]
    %v726 = vld [vmem:[#allocation7 + $0x60] sm:$0xff]
    %v727 = vld [vmem:[#allocation7 + $0x68] sm:$0xff]
    %v728 = vld [vmem:[#allocation7 + $0x70] sm:$0xff]
    %v729 = vld [vmem:[#allocation7 + $0x78] sm:$0xff]
    %v730 = vld [vmem:[%s8] sm:$0x1]
    %v732 = vlaneseq
    %v733 = vshrl.u32 %v732, 7
    %v734 = vsub.s32 0, %v733
    %v735 = vrot.slane %v730, %v734
    %737 = vmatprep.subr.mxu0 0.0
    %738 = vmatpush1.msra.mxu0 %v714
    %739 = vmatprep.subr.mxu0 0.0
    %740 = vmatpush1.msra.mxu0 %v715
    %741 = vmatprep.subr.mxu0 0.0
    %742 = vmatpush1.msra.mxu0 %v716
    %743 = vmatprep.subr.mxu0 0.0
    %744 = vmatpush1.msra.mxu0 %v717
    %745 = vmatprep.subr.mxu0 0.0
    %746 = vmatpush1.msra.mxu0 %v718
    %747 = vmatprep.subr.mxu0 0.0
    %748 = vmatpush1.msra.mxu0 %v719
    %749 = vmatprep.subr.mxu0 0.0
    %750 = vmatpush1.msra.mxu0 %v720
    %751 = vmatprep.subr.mxu0 0.0
    %752 = vmatpush1.msra.mxu0 %v721
    %753 = vmatprep.subr.mxu0 0.0
    %754 = vmatpush1.msra.mxu0 %v722
    %755 = vmatprep.subr.mxu0 0.0
    %756 = vmatpush1.msra.mxu0 %v723
    %757 = vmatprep.subr.mxu0 0.0
    %758 = vmatpush1.msra.mxu0 %v724
    %759 = vmatprep.subr.mxu0 0.0
    %760 = vmatpush1.msra.mxu0 %v725
    %761 = vmatprep.subr.mxu0 0.0
    %762 = vmatpush1.msra.mxu0 %v726
    %763 = vmatprep.subr.mxu0 0.0
    %764 = vmatpush1.msra.mxu0 %v727
    %765 = vmatprep.subr.mxu0 0.0
    %766 = vmatpush1.msra.mxu0 %v728
    %767 = vmatprep.subr.mxu0 0.0
    %768 = vmatpush1.msra.mxu0 %v729
    %769 = vmatprep.subr.mxu0 0.0
    %770 = vmatpush1.msra.mxu0 0.0
    %771 = vmatprep.subr.mxu0 0.0
    %772 = vmatpush1.msra.mxu0 0.0
    %773 = vmatprep.subr.mxu0 0.0
    %774 = vmatpush1.msra.mxu0 0.0
    %775 = vmatprep.subr.mxu0 0.0
    %776 = vmatpush1.msra.mxu0 0.0
    %777 = vmatprep.subr.mxu0 0.0
    %778 = vmatpush1.msra.mxu0 0.0
    %779 = vmatprep.subr.mxu0 0.0
    %780 = vmatpush1.msra.mxu0 0.0
    %781 = vmatprep.subr.mxu0 0.0
    %782 = vmatpush1.msra.mxu0 0.0
    %783 = vmatprep.subr.mxu0 0.0
    %784 = vmatpush1.msra.mxu0 0.0
    %785 = vmatprep.subr.mxu0 0.0
    %786 = vmatpush1.msra.mxu0 0.0
    %787 = vmatprep.subr.mxu0 0.0
    %788 = vmatpush1.msra.mxu0 0.0
    %789 = vmatprep.subr.mxu0 0.0
    %790 = vmatpush1.msra.mxu0 0.0
    %791 = vmatprep.subr.mxu0 0.0
    %792 = vmatpush1.msra.mxu0 0.0
    %793 = vmatprep.subr.mxu0 0.0
    %794 = vmatpush1.msra.mxu0 0.0
    %795 = vmatprep.subr.mxu0 0.0
    %796 = vmatpush1.msra.mxu0 0.0
    %797 = vmatprep.subr.mxu0 0.0
    %798 = vmatpush1.msra.mxu0 0.0
    %799 = vmatprep.subr.mxu0 0.0
    %800 = vmatpush1.msra.mxu0 0.0
    %801 = vmatprep.mubr.f32.mxu0 0.0
    %802 = vmatmul.mubr.f32.gmra.mrb[0].mxu0 %v713
    %v803 = vpop.f32.mrb[0].mxu0
    %v804 = vadd.f32 %v735, %v803
    %v805 = vpop.f32.mrb[0].mxu0
    %806 = vdwg.mxu0
    %807 = vst [vmem:[%s9] sm:$0xff] %v804
    // Predicated region
    $region54: #{bddqn_forward.1} parent=1 // pred_check
      _
    $region55: #{bddqn_forward.1} parent=1 // pred_check_branch
      %809 = sbr.rel (0) target = $region57
    $region56: #{bddqn_forward.1} parent=1 // pred_region
      _
    $region57: #{bddqn_forward.1} parent=1 // pred_fallthru
      _
    // Predicated region
    $region58: #{bddqn_forward.1} parent=1 // pred_check
      _
    $region59: #{bddqn_forward.1} parent=1 // pred_check_branch
      %811 = sbr.rel (0) target = $region61
    $region60: #{bddqn_forward.1} parent=1 // pred_region
      _
    $region61: #{bddqn_forward.1} parent=1 // pred_fallthru
      _
    %812 = vsyncpa [#allocation3], 1
    %813 = vsyncpa [#allocation5], 1
    %814 = vsyncpa [#allocation8], 1

</llo_original>
